<compile_context>
chip_gen: v5e
topology: v5e:2x2
jax: 0.10.0
libtpu: 0.0.40
codegen_flags: <defaults>
</compile_context>

<pallas_src>
import functools

import jax
import jax.numpy as jnp
from jax.experimental import pallas as pl
from jax.experimental.pallas import tpu as pltpu


def _focal_kernel(alpha_ref, preds_ref, tgt_ref, out_ref, *,
                  num_classes, tile_sublanes, num_sublane_blocks, gamma):
    C, TB, SB = num_classes, tile_sublanes, num_sublane_blocks

    x = preds_ref[0].astype(jnp.float32)          # (C, TB, 128), compute in f32
    t = tgt_ref[0, 0]                             # (TB, 128) int32 targets

    # Stable softmax pieces.  All reductions are over the leading class axis,
    # i.e. C-1 elementwise ops on full (8,128) vregs (no XLU, no MXU).
    m = jnp.max(x, axis=0, keepdims=True)         # (1, TB, 128)
    shifted = x - m                               # (C, TB, 128)
    e = jnp.exp(shifted)                          # (C, TB, 128): C EUP exps
    denom = jnp.sum(e, axis=0)                    # (TB, 128)

    cls = jax.lax.broadcasted_iota(jnp.int32, (C, TB, 128), 0)
    sel = cls == t[None, :, :]                    # one-hot target mask
    shifted_t = jnp.sum(jnp.where(sel, shifted, 0.0), axis=0)    # (TB, 128)
    exp_t = jnp.sum(jnp.where(sel, e, 0.0), axis=0)              # reuse exps

    # alpha gather from SMEM scalars.  Padded / garbage targets (-1 or OOB
    # junk on the ragged edge) match no class -> alpha_t = 0.
    alpha_t = jnp.zeros((TB, 128), jnp.float32)
    if C <= 32:
        for c in range(C):
            alpha_t = alpha_t + jnp.where(sel[c], alpha_ref[c], 0.0)
    else:
        alpha_t = jax.lax.fori_loop(
            0, C, lambda c, acc: acc + jnp.where(t == c, alpha_ref[c], 0.0),
            alpha_t)

    logp_t = shifted_t - jnp.log(denom)           # log_softmax at target class
    p_t = exp_t * pl.reciprocal(denom)            # softmax at target (exact)
    d = 1.0 - p_t

    g = float(gamma)
    if g.is_integer() and 0.0 <= g <= 8.0:        # pow -> VPU multiply chain
        gi = int(g)
        dpow = jnp.ones_like(d) if gi == 0 else d
        for _ in range(max(gi - 1, 0)):
            dpow = dpow * d
    else:
        dpow = jnp.power(jnp.maximum(d, 0.0), g)  # clamp: guard pow(neg, frac)

    loss = -alpha_t * dpow * logp_t               # (TB, 128) per-element loss

    def _partial(v):                              # sublane-dense tree reduce
        return jnp.sum(v.reshape(TB // 8, 8, 128), axis=0)      # (8, 128)

    if SB % TB != 0:
        # Only the last spatial tile reads past SB; mask it there (select,
        # not multiply, so NaN/Inf from garbage reads cannot leak).
        last = (SB + TB - 1) // TB - 1            # static Python int
        j = pl.program_id(1)

        @pl.when(j == last)
        def _():
            row = jax.lax.broadcasted_iota(jnp.int32, (TB, 128), 0) + last * TB
            out_ref[...] = _partial(jnp.where(row < SB, loss, 0.0))[None, None]

        @pl.when(j != last)
        def _():
            out_ref[...] = _partial(loss)[None, None]
    else:
        out_ref[...] = _partial(loss)[None, None]


def focal_loss_pallas(preds_nchw, targets_nhw, alpha, *, gamma=2.0,
                      size_average=True, vmem_budget_bytes=16 * 1024 * 1024):
    """preds_nchw: (N, C, H, W) float32/bfloat16; targets_nhw: (N, H, W) int;
    alpha: (C,), (C, 1) or (1, C)."""
    N, C, H, W = preds_nchw.shape
    S = H * W

    x = preds_nchw.reshape(N, C, S)                       # free view, no transpose
    t = targets_nhw.reshape(N, 1, S).astype(jnp.int32)
    a = jnp.reshape(alpha, (C,)).astype(jnp.float32)

    # Sublane-dense layout: spatial -> (SB, 128) with SB >= 8.  Padding (only
    # when S % 128 != 0 or S < 1024) uses target = -1, which contributes
    # exactly 0 loss, so no extra in-kernel masking is needed for it.
    SB = max(8, -(-S // 128))
    S_pad = SB * 128
    if S_pad != S:
        x = jnp.pad(x, ((0, 0), (0, 0), (0, S_pad - S)))
        t = jnp.pad(t, ((0, 0), (0, 0), (0, S_pad - S)), constant_values=-1)
    x4 = x.reshape(N, C, SB, 128)
    t4 = t.reshape(N, 1, SB, 128)

    # Tile size: as big as a conservative VMEM budget allows, counting the
    # double-buffered preds+targets blocks plus ~6C f32 in-kernel
    # intermediates per element.  Multiple of 8 sublane rows so the block
    # tiles (8,128) vregs exactly (ragged grid tail is masked in-kernel).
    px = jnp.dtype(preds_nchw.dtype).itemsize
    per_row = 128 * (2 * (C * px + 4) + 6 * C * 4 + 12 * 4)
    TB = max(8, min(2048, int(vmem_budget_bytes // per_row)))
    TB = min(TB, SB)
    TB = max(8, (TB // 8) * 8)
    num_tiles = -(-SB // TB)
    grid = (N, num_tiles)
    # TODO(synk): for v7x with N*num_tiles < 2, block multiple batch images
    # per grid step so both TensorCores get work.

    kernel = functools.partial(
        _focal_kernel, num_classes=C, tile_sublanes=TB,
        num_sublane_blocks=SB, gamma=float(gamma))

    partials = pl.pallas_call(
        kernel,
        out_shape=jax.ShapeDtypeStruct((N, num_tiles, 8, 128), jnp.float32),
        grid_spec=pltpu.PrefetchScalarGridSpec(
            num_scalar_prefetch=1,                        # alpha -> SMEM
            grid=grid,
            in_specs=[
                pl.BlockSpec((1, C, TB, 128), lambda n, j, a_ref: (n, 0, j, 0)),
                pl.BlockSpec((1, 1, TB, 128), lambda n, j, a_ref: (n, 0, j, 0)),
            ],
            out_specs=pl.BlockSpec((1, 1, 8, 128),
                                   lambda n, j, a_ref: (n, j, 0, 0)),
        ),
        compiler_params=pltpu.CompilerParams(
            dimension_semantics=("parallel", "parallel"),
            vmem_limit_bytes=32 * 1024 * 1024),
    )(a, x4, t4)

    total = jnp.sum(partials)                     # tiny XLA reduce over partials
    if size_average:
        total = total / jnp.float32(N * S)
    return total


def _focal_loss_ref(preds_nchw, targets_nhw, alpha, gamma=2.0, size_average=True):
    N, C, H, W = preds_nchw.shape
    x = jnp.transpose(preds_nchw, (0, 2, 3, 1)).reshape(-1, C).astype(jnp.float32)
    t = targets_nhw.reshape(-1).astype(jnp.int32)
    P = jax.nn.softmax(x, axis=1)
    logP = jax.nn.log_softmax(x, axis=1)
    mask = jax.nn.one_hot(t, C, dtype=jnp.float32)
    probs = jnp.sum(P * mask, axis=1)
    log_probs = jnp.sum(logP * mask, axis=1)
    alpha_t = jnp.reshape(alpha, (-1,))[t]
    batch_loss = -alpha_t * (1.0 - probs) ** gamma * log_probs
    return jnp.mean(batch_loss) if size_average else jnp.sum(batch_loss)


# TODO(synk): the optional `weight` argument of FocalLoss.forward (per-element
# re-weighting, defaults to False) is not implemented.

if __name__ == "__main__":
    key = jax.random.PRNGKey(0)
    k1, k2, k3, k4 = jax.random.split(key, 4)

    # Test 1: module-default shapes (alpha=None -> ones(class_num, 1)).
    N, C, H, W = 2, 4, 16, 16
    preds = jax.random.normal(k1, (N, C, H, W), dtype=jnp.float32)
    targets = jax.random.randint(k2, (N, H, W), 0, C, dtype=jnp.int32)
    alpha = jnp.ones((C, 1), dtype=jnp.float32)

    loss = focal_loss_pallas(preds, targets, alpha, gamma=2.0, size_average=True)
    loss = jax.block_until_ready(loss)
    ref = _focal_loss_ref(preds, targets, alpha, gamma=2.0, size_average=True)
    assert jnp.allclose(loss, ref, rtol=1e-5, atol=1e-5), (loss, ref)

    # Test 2: ragged spatial extent + non-uniform alpha (exercises the padded
    # lanes, the masked last grid tile, and the SMEM alpha gather).
    N2, C2, H2, W2 = 2, 3, 33, 33
    preds2 = jax.random.normal(k3, (N2, C2, H2, W2), dtype=jnp.float32)
    targets2 = jax.random.randint(k4, (N2, H2, W2), 0, C2, dtype=jnp.int32)
    alpha2 = (0.5 * jnp.arange(1, C2 + 1, dtype=jnp.float32)).reshape(C2, 1)

    loss2 = focal_loss_pallas(preds2, targets2, alpha2, gamma=2.0,
                              size_average=True)
    loss2 = jax.block_until_ready(loss2)
    ref2 = _focal_loss_ref(preds2, targets2, alpha2, gamma=2.0,
                           size_average=True)
    assert jnp.allclose(loss2, ref2, rtol=1e-5, atol=1e-5), (loss2, ref2)

    print("KERNEL_OK")
</pallas_src>

<mosaic_0001>
module attributes {stable_mosaic.version = 11 : i64} {
  func.func @_focal_kernel(%arg0: i32, %arg1: i32, %arg2: memref<4xf32, #tpu.memory_space<smem>>, %arg3: memref<1x4x8x128xf32, #tpu.memory_space<vmem>>, %arg4: memref<1x1x8x128xi32, #tpu.memory_space<vmem>>, %arg5: memref<1x1x8x128xf32, #tpu.memory_space<vmem>>) attributes {dimension_semantics = [#tpu.dimension_semantics<parallel>, #tpu.dimension_semantics<parallel>], iteration_bounds = array<i64: 2, 1>, scalar_prefetch = 1 : i64, scratch_operands = 0 : i64, tpu.core_type = #tpu.core_type<tc>, window_params = [{transform_indices = @transform_0, window_bounds = array<i64: 1, 4, 8, 128>}, {transform_indices = @transform_1, window_bounds = array<i64: 1, 1, 8, 128>}, {transform_indices = @transform_2, window_bounds = array<i64: 1, 1, 8, 128>}]} {
    %c0 = arith.constant 0 : index
    %c0_0 = arith.constant 0 : index
    %c0_1 = arith.constant 0 : index
    %c0_2 = arith.constant 0 : index
    %0 = vector.load %arg3[%c0, %c0_0, %c0_1, %c0_2] : memref<1x4x8x128xf32, #tpu.memory_space<vmem>>, vector<1x4x8x128xf32>
    %1 = vector.shape_cast %0 : vector<1x4x8x128xf32> to vector<4x8x128xf32>
    %c0_3 = arith.constant 0 : index
    %c0_4 = arith.constant 0 : index
    %c0_5 = arith.constant 0 : index
    %c0_6 = arith.constant 0 : index
    %2 = vector.load %arg4[%c0_3, %c0_4, %c0_5, %c0_6] : memref<1x1x8x128xi32, #tpu.memory_space<vmem>>, vector<1x1x8x128xi32>
    %3 = vector.shape_cast %2 : vector<1x1x8x128xi32> to vector<8x128xi32>
    %cst = arith.constant dense<0xFF800000> : vector<8x128xf32>
    %4 = vector.multi_reduction <maximumf>, %1, %cst [0] : vector<4x8x128xf32> to vector<8x128xf32>
    %5 = vector.shape_cast %4 : vector<8x128xf32> to vector<1x8x128xf32>
    %6 = vector.broadcast %5 : vector<1x8x128xf32> to vector<4x8x128xf32>
    %7 = arith.subf %1, %6 : vector<4x8x128xf32>
    %8 = math.exp %7 : vector<4x8x128xf32>
    %cst_7 = arith.constant dense<0.000000e+00> : vector<8x128xf32>
    %9 = vector.multi_reduction <add>, %8, %cst_7 [0] : vector<4x8x128xf32> to vector<8x128xf32>
    %10 = tpu.iota {dimensions = array<i32: 0>} : vector<4x8x128xi32>
    %11 = vector.shape_cast %3 : vector<8x128xi32> to vector<1x8x128xi32>
    %12 = vector.broadcast %11 : vector<1x8x128xi32> to vector<4x8x128xi32>
    %13 = arith.cmpi eq, %10, %12 : vector<4x8x128xi32>
    %cst_8 = arith.constant 0.000000e+00 : f32
    %14 = vector.broadcast %cst_8 : f32 to vector<4x8x128xf32>
    %15 = arith.select %13, %7, %14 : vector<4x8x128xi1>, vector<4x8x128xf32>
    %cst_9 = arith.constant dense<0.000000e+00> : vector<8x128xf32>
    %16 = vector.multi_reduction <add>, %15, %cst_9 [0] : vector<4x8x128xf32> to vector<8x128xf32>
    %cst_10 = arith.constant 0.000000e+00 : f32
    %17 = vector.broadcast %cst_10 : f32 to vector<4x8x128xf32>
    %18 = arith.select %13, %8, %17 : vector<4x8x128xi1>, vector<4x8x128xf32>
    %cst_11 = arith.constant dense<0.000000e+00> : vector<8x128xf32>
    %19 = vector.multi_reduction <add>, %18, %cst_11 [0] : vector<4x8x128xf32> to vector<8x128xf32>
    %cst_12 = arith.constant 0.000000e+00 : f32
    %20 = vector.broadcast %cst_12 : f32 to vector<8x128xf32>
    %21 = vector.extract_strided_slice %13 {offsets = [0, 0, 0], sizes = [1, 8, 128], strides = [1, 1, 1]} : vector<4x8x128xi1> to vector<1x8x128xi1>
    %22 = vector.shape_cast %21 : vector<1x8x128xi1> to vector<8x128xi1>
    %c0_13 = arith.constant 0 : index
    %23 = memref.load %arg2[%c0_13] : memref<4xf32, #tpu.memory_space<smem>>
    %cst_14 = arith.constant 0.000000e+00 : f32
    %24 = vector.broadcast %23 : f32 to vector<8x128xf32>
    %25 = vector.broadcast %cst_14 : f32 to vector<8x128xf32>
    %26 = arith.select %22, %24, %25 : vector<8x128xi1>, vector<8x128xf32>
    %27 = arith.addf %20, %26 : vector<8x128xf32>
    %28 = vector.extract_strided_slice %13 {offsets = [1, 0, 0], sizes = [1, 8, 128], strides = [1, 1, 1]} : vector<4x8x128xi1> to vector<1x8x128xi1>
    %29 = vector.shape_cast %28 : vector<1x8x128xi1> to vector<8x128xi1>
    %c1 = arith.constant 1 : index
    %30 = memref.load %arg2[%c1] : memref<4xf32, #tpu.memory_space<smem>>
    %cst_15 = arith.constant 0.000000e+00 : f32
    %31 = vector.broadcast %30 : f32 to vector<8x128xf32>
    %32 = vector.broadcast %cst_15 : f32 to vector<8x128xf32>
    %33 = arith.select %29, %31, %32 : vector<8x128xi1>, vector<8x128xf32>
    %34 = arith.addf %27, %33 : vector<8x128xf32>
    %35 = vector.extract_strided_slice %13 {offsets = [2, 0, 0], sizes = [1, 8, 128], strides = [1, 1, 1]} : vector<4x8x128xi1> to vector<1x8x128xi1>
    %36 = vector.shape_cast %35 : vector<1x8x128xi1> to vector<8x128xi1>
    %c2 = arith.constant 2 : index
    %37 = memref.load %arg2[%c2] : memref<4xf32, #tpu.memory_space<smem>>
    %cst_16 = arith.constant 0.000000e+00 : f32
    %38 = vector.broadcast %37 : f32 to vector<8x128xf32>
    %39 = vector.broadcast %cst_16 : f32 to vector<8x128xf32>
    %40 = arith.select %36, %38, %39 : vector<8x128xi1>, vector<8x128xf32>
    %41 = arith.addf %34, %40 : vector<8x128xf32>
    %42 = vector.extract_strided_slice %13 {offsets = [3, 0, 0], sizes = [1, 8, 128], strides = [1, 1, 1]} : vector<4x8x128xi1> to vector<1x8x128xi1>
    %43 = vector.shape_cast %42 : vector<1x8x128xi1> to vector<8x128xi1>
    %c3 = arith.constant 3 : index
    %44 = memref.load %arg2[%c3] : memref<4xf32, #tpu.memory_space<smem>>
    %cst_17 = arith.constant 0.000000e+00 : f32
    %45 = vector.broadcast %44 : f32 to vector<8x128xf32>
    %46 = vector.broadcast %cst_17 : f32 to vector<8x128xf32>
    %47 = arith.select %43, %45, %46 : vector<8x128xi1>, vector<8x128xf32>
    %48 = arith.addf %41, %47 : vector<8x128xf32>
    %49 = math.log %9 : vector<8x128xf32>
    %50 = arith.subf %16, %49 : vector<8x128xf32>
    %51 = tpu.reciprocal %9 : vector<8x128xf32> -> vector<8x128xf32>
    %52 = arith.mulf %19, %51 : vector<8x128xf32>
    %cst_18 = arith.constant 1.000000e+00 : f32
    %53 = vector.broadcast %cst_18 : f32 to vector<8x128xf32>
    %54 = arith.subf %53, %52 : vector<8x128xf32>
    %55 = arith.mulf %54, %54 : vector<8x128xf32>
    %cst_19 = arith.constant 0.000000e+00 : f32
    %56 = vector.broadcast %cst_19 : f32 to vector<8x128xf32>
    %57 = arith.subf %56, %48 : vector<8x128xf32>
    %58 = arith.mulf %57, %55 : vector<8x128xf32>
    %59 = arith.mulf %58, %50 : vector<8x128xf32>
    %60 = vector.shape_cast %59 : vector<8x128xf32> to vector<1x8x128xf32>
    %cst_20 = arith.constant dense<0.000000e+00> : vector<8x128xf32>
    %61 = vector.multi_reduction <add>, %60, %cst_20 [0] : vector<1x8x128xf32> to vector<8x128xf32>
    %62 = vector.shape_cast %61 : vector<8x128xf32> to vector<1x1x8x128xf32>
    %c0_21 = arith.constant 0 : index
    %c0_22 = arith.constant 0 : index
    %c0_23 = arith.constant 0 : index
    %c0_24 = arith.constant 0 : index
    %63 = vector.load %arg5[%c0_21, %c0_22, %c0_23, %c0_24] : memref<1x1x8x128xf32, #tpu.memory_space<vmem>>, vector<1x1x8x128xf32>
    tpu.vector_store %arg5[%c0_21, %c0_22, %c0_23, %c0_24], %62 {strides = array<i32>} : memref<1x1x8x128xf32, #tpu.memory_space<vmem>>, vector<1x1x8x128xf32>,
    return
  }
  func.func @transform_0(%arg0: i32, %arg1: i32, %arg2: memref<4xf32, #tpu.memory_space<smem>>) -> (i32, i32, i32, i32) {
    %c0_i32 = arith.constant 0 : i32
    %c0_i32_0 = arith.constant 0 : i32
    %c0_i32_1 = arith.constant 0 : i32
    return %arg0, %c0_i32, %arg1, %c0_i32_0 : i32, i32, i32, i32
  }
  func.func @transform_1(%arg0: i32, %arg1: i32, %arg2: memref<4xf32, #tpu.memory_space<smem>>) -> (i32, i32, i32, i32) {
    %c0_i32 = arith.constant 0 : i32
    %c0_i32_0 = arith.constant 0 : i32
    %c0_i32_1 = arith.constant 0 : i32
    return %arg0, %c0_i32, %arg1, %c0_i32_0 : i32, i32, i32, i32
  }
  func.func @transform_2(%arg0: i32, %arg1: i32, %arg2: memref<4xf32, #tpu.memory_space<smem>>) -> (i32, i32, i32, i32) {
    %c0_i32 = arith.constant 0 : i32
    %c0_i32_0 = arith.constant 0 : i32
    %c0_i32_1 = arith.constant 0 : i32
    return %arg0, %arg1, %c0_i32, %c0_i32_0 : i32, i32, i32, i32
  }
}

</mosaic_0001>

<llo_original>
// kernel: tpu_custom_call.1
$region0: #{tpu_custom_call.1}
  #allocation0 [shape = 'u32[]', space=smem, size = 0x4, offset = 0x4, fixed_abs, tag = 'smem constant byte address 0x4 - core index']
  #allocation1 [shape = 'u32[72,128]{1,0:T(1,128)}', space=vmem, size = 0x9000, scoped, tag = 'internal scratch']
  #allocation2 [shape = 's32[1]{0}', space=sflag, size = 0x4, scoped, tag = 'scoped memory for tpu_custom_call.1']
  #allocation3 [shape = 'u8[512]{0}', space=smem, size = 0x200, scoped, tag = 'prefetched SMEM operand 0']
  %s0 = inlined_call_operand.hbm [shape: f32[4], index: 0, kind: input, shape index: {}]
  %s1 = inlined_call_operand.hbm [shape: f32[2,4,8,128], index: 1, kind: input, shape index: {}]
  %s2 = inlined_call_operand.hbm [shape: s32[2,1,8,128], index: 2, kind: input, shape index: {}]
  %s3 = inlined_call_operand.hbm [shape: f32[2,1,8,128], index: 3, kind: output, shape index: {}]
  %s4 = sld [smem:[#allocation0]]
  $region49: #{tpu_custom_call.1} parent=0
    _
  %s6 = ssub.s32 1, %s4
  %s7 = scalar_select 0, %s6, %s4
  %s9 = sshll.u32 %s0, 4
  %s10 = int_to_ptr.hbm [resolvable:$true] %s9
  %12 = dma.hbm_to_smem %s10, 16, [#allocation3], [#allocation2]
  %14 = dma.done [#allocation2], 16
  %15 = sfence
  $region1: #{tpu_custom_call.1} parent=0
    #allocation4 [shape = 'u8[32768]{0}', space=vmem, size = 0x8000, scoped, tag = 'input window, operand 1']
    #allocation5 [shape = 's32[2]{0}', space=sflag, size = 0x8, scoped, tag = 'scoped memory for tpu_custom_call.1']
    #allocation6 [shape = 's32[2]{0}', space=sflag, size = 0x8, scoped, tag = 'scoped memory for tpu_custom_call.1']
    #allocation7 [shape = 'u8[8192]{0}', space=vmem, size = 0x2000, scoped, tag = 'input window, operand 2']
    #allocation8 [shape = 's32[2]{0}', space=sflag, size = 0x8, scoped, tag = 'scoped memory for tpu_custom_call.1']
    #allocation9 [shape = 'u8[8192]{0}', space=vmem, size = 0x2000, scoped, tag = 'output window, operand 0']
    %16 = vsyncpa [#allocation5], 0
    %s17 = scalar_lea.sflag [#allocation5], 1
    %18 = vsyncpa %s17, 0
    %19 = vsyncpa [#allocation8], 0
    %s20 = scalar_lea.sflag [#allocation8], 1
    %21 = vsyncpa %s20, 0
    %22 = vsyncpa [#allocation6], 0
    %s23 = scalar_lea.sflag [#allocation6], 1
    %24 = vsyncpa %s23, 0
    loop: start=0, step=1, limit=4
    $region2: #{tpu_custom_call.1} parent=1 // loop_pre_header
      _
    $region3: #{tpu_custom_call.1} parent=1 // loop_header
      %s26 = sphi 0, %s30
      %p27 = scmp.ge.s32.totalorder %s26, 4
      %s33 = sphi 0, %s45
      %s34 = sphi 0, %s41
      %s35 = sphi 0, %s33
      %s36 = sphi 0, %s34
      %s37 = sphi 0, %s35
      %s38 = sphi 0, %s36
      %s50 = sphi 0, %s52
      %s53 = sphi 0, %s50
      %s54 = sphi 0, %s53
      %s70 = sphi 0, %s54
      %s78 = sphi 0, %s80
      %s81 = sphi 0, %s78
      %s82 = sphi 0, %s81
      %s98 = sphi 0, %s82
      %s106 = sphi 0, %s108
      %s109 = sphi 0, %s106
      %s110 = sphi 0, %s109
      %s126 = sphi 0, %s110
    $region4: #{tpu_custom_call.1} parent=1 // loop_header_branch
      %29 = sbr.rel (%p27) target = $region8
    $region5: #{tpu_custom_call.1} parent=1 // loop_body
      %s31 = ssub.s32 %s26, 1
      %s32 = ssub.s32 %s26, 2
      %s39 = sadd.s32 1, %s34
      %p40 = scmp.ge.s32.totalorder %s39, 1
      %s41 = scalar_select %p40, 0, %s39
      %s42 = sadd.s32 1, %s33
      %s43 = scalar_select %p40, %s42, %s33
      %p44 = scmp.ge.s32.totalorder %s43, 2
      %s45 = scalar_select %p44, 0, %s43
      %s46 = ssub.s32 %s33, %s45
      %s47 = ssub.s32 %s34, %s41
      %s48 = sor.u32 %s46, %s47
      %p49 = scmp.eq.s32.totalorder %s48, 0
      %s51 = sadd.s32 %s50, 1
      %s52 = scalar_select %p49, %s50, %s51
      %p55 = pneg %p49
      %p56 = scmp.eq.s32.totalorder %s26, 1
      %p57 = por %p55, %p56
      %p58 = scmp.ne.s32.totalorder %s50, %s53
      %p59 = scmp.eq.s32.totalorder %s26, 0
      %p60 = por %p58, %p59
      %p61 = scmp.ne.s32.totalorder %s50, %s53
      %p62 = scmp.eq.s32.totalorder %s31, 1
      %p63 = por %p61, %p62
      %p64 = scmp.ne.s32.totalorder %s53, %s54
      %p65 = scmp.eq.s32.totalorder %s31, 0
      %p66 = por %p64, %p65
      %p67 = scmp.ne.s32.totalorder %s53, %s54
      %p68 = scmp.eq.s32.totalorder %s32, 1
      %p69 = por %p67, %p68
      %p71 = scmp.ne.s32.totalorder %s54, %s70
      %p72 = scmp.eq.s32.totalorder %s32, 0
      %p73 = por %p71, %p72
      %s74 = ssub.s32 %s33, %s45
      %s75 = ssub.s32 %s34, %s41
      %s76 = sor.u32 %s74, %s75
      %p77 = scmp.eq.s32.totalorder %s76, 0
      %s79 = sadd.s32 %s78, 1
      %s80 = scalar_select %p77, %s78, %s79
      %p83 = pneg %p77
      %p84 = scmp.eq.s32.totalorder %s26, 1
      %p85 = por %p83, %p84
      %p86 = scmp.ne.s32.totalorder %s78, %s81
      %p87 = scmp.eq.s32.totalorder %s26, 0
      %p88 = por %p86, %p87
      %p89 = scmp.ne.s32.totalorder %s78, %s81
      %p90 = scmp.eq.s32.totalorder %s31, 1
      %p91 = por %p89, %p90
      %p92 = scmp.ne.s32.totalorder %s81, %s82
      %p93 = scmp.eq.s32.totalorder %s31, 0
      %p94 = por %p92, %p93
      %p95 = scmp.ne.s32.totalorder %s81, %s82
      %p96 = scmp.eq.s32.totalorder %s32, 1
      %p97 = por %p95, %p96
      %p99 = scmp.ne.s32.totalorder %s82, %s98
      %p100 = scmp.eq.s32.totalorder %s32, 0
      %p101 = por %p99, %p100
      %s102 = ssub.s32 %s33, %s45
      %s103 = ssub.s32 %s34, %s41
      %s104 = sor.u32 %s102, %s103
      %p105 = scmp.eq.s32.totalorder %s104, 0
      %s107 = sadd.s32 %s106, 1
      %s108 = scalar_select %p105, %s106, %s107
      %p111 = pneg %p105
      %p112 = scmp.eq.s32.totalorder %s26, 1
      %p113 = por %p111, %p112
      %p114 = scmp.ne.s32.totalorder %s106, %s109
      %p115 = scmp.eq.s32.totalorder %s26, 0
      %p116 = por %p114, %p115
      %p117 = scmp.ne.s32.totalorder %s106, %s109
      %p118 = scmp.eq.s32.totalorder %s31, 1
      %p119 = por %p117, %p118
      %p120 = scmp.ne.s32.totalorder %s109, %s110
      %p121 = scmp.eq.s32.totalorder %s31, 0
      %p122 = por %p120, %p121
      %p123 = scmp.ne.s32.totalorder %s109, %s110
      %p124 = scmp.eq.s32.totalorder %s32, 1
      %p125 = por %p123, %p124
      %p127 = scmp.ne.s32.totalorder %s110, %s126
      %p128 = scmp.eq.s32.totalorder %s32, 0
      %p129 = por %p127, %p128
      %p130 = scmp.le.s32.totalorder 1, %s26
      %p131 = scmp.lt.s32.totalorder %s26, 3
      %p132 = pnand %p130, %p131
      %p133 = pneg %p132
      // Predicated region
      $region9: #{tpu_custom_call.1} parent=5 // pred_check
        _
      $region10: #{tpu_custom_call.1} parent=5 // pred_check_branch
        %135 = sbr.rel (%p132) target = $region12
      $region11: #{tpu_custom_call.1} parent=5 // pred_region
        %s136 = ssub.s32 %s26, 1
      $region12: #{tpu_custom_call.1} parent=5 // pred_fallthru
        _
      %p137 = scmp.lt.s32.totalorder %s26, 2
      // Predicated region
      $region13: #{tpu_custom_call.1} parent=5 // pred_check
        %p138 = pneg %p137
      $region14: #{tpu_custom_call.1} parent=5 // pred_check_branch
        %140 = sbr.rel (%p138) target = $region16
      $region15: #{tpu_custom_call.1} parent=5 // pred_region
        // Predicated region
        $region17: #{tpu_custom_call.1} parent=15 // pred_check
          %p141 = pneg %p60
        $region18: #{tpu_custom_call.1} parent=15 // pred_check_branch
          %143 = sbr.rel (%p141) target = $region20
        $region19: #{tpu_custom_call.1} parent=15 // pred_region
          %s144 = sand.u32 %s50, 1
          %s145 = scalar_lea.sflag [#allocation5], %s144
          %s146 = sand.u32 %s50, 1
          %s147 = smul.addr %s146, 32
          %s148 = scalar_lea.vmem [#allocation4], %s147
          %150 = vsyncadd %s145, 0
          %s151 = smul.addr %s33, 4
          %s152 = sadd.s32 %s34, %s151
          %s153 = smul.addr %s152, 8
          %s154 = scalar_lea.hbm %s1, %s153
          %s155 = sshll.u32 %s154, 4
          %s156 = int_to_ptr.hbm [resolvable:$true] %s155
          %s157 = sshll.u32 %s148, 4
          %s158 = int_to_ptr.vmem [resolvable:$true] %s157
          %163 = dma.hbm_to_vmem [thread:$0]  %s156, 512, %s158, %s145, 128, 128, 8
        $region20: #{tpu_custom_call.1} parent=15 // pred_fallthru
          _
        // Predicated region
        $region21: #{tpu_custom_call.1} parent=15 // pred_check
          %p164 = pneg %p88
        $region22: #{tpu_custom_call.1} parent=15 // pred_check_branch
          %166 = sbr.rel (%p164) target = $region24
        $region23: #{tpu_custom_call.1} parent=15 // pred_region
          %s167 = sand.u32 %s78, 1
          %s168 = scalar_lea.sflag [#allocation8], %s167
          %s169 = sand.u32 %s78, 1
          %s170 = smul.addr %s169, 8
          %s171 = scalar_lea.vmem [#allocation7], %s170
          %173 = vsyncadd %s168, 0
          %s174 = sadd.s32 %s34, %s33
          %s175 = smul.addr %s174, 8
          %s176 = scalar_lea.hbm %s2, %s175
          %s178 = sshll.u32 %s176, 4
          %s179 = int_to_ptr.hbm [resolvable:$true] %s178
          %s180 = sshll.u32 %s171, 4
          %s181 = int_to_ptr.vmem [resolvable:$true] %s180
          %183 = dma.hbm_to_vmem [thread:$0]  %s179, 128, %s181, %s168
        $region24: #{tpu_custom_call.1} parent=15 // pred_fallthru
          _
      $region16: #{tpu_custom_call.1} parent=5 // pred_fallthru
        _
      %p184 = scmp.le.s32.totalorder 1, %s26
      %p185 = scmp.lt.s32.totalorder %s26, 3
      %p186 = pnand %p184, %p185
      %p187 = pneg %p186
      // Predicated region
      $region25: #{tpu_custom_call.1} parent=5 // pred_check
        _
      $region26: #{tpu_custom_call.1} parent=5 // pred_check_branch
        %189 = sbr.rel (%p186) target = $region28
      $region27: #{tpu_custom_call.1} parent=5 // pred_region
        %s190 = ssub.s32 %s26, 1
        %s191 = sand.u32 %s53, 1
        %s192 = scalar_lea.sflag [#allocation5], %s191
        %s193 = sand.u32 %s53, 1
        %s194 = smul.addr %s193, 32
        %s195 = scalar_lea.vmem [#allocation4], %s194
        // Predicated region
        $region29: #{tpu_custom_call.1} parent=27 // pred_check
          %p196 = pneg %p66
        $region30: #{tpu_custom_call.1} parent=27 // pred_check_branch
          %198 = sbr.rel (%p196) target = $region32
        $region31: #{tpu_custom_call.1} parent=27 // pred_region
          %200 = dma.done %s192, 512
        $region32: #{tpu_custom_call.1} parent=27 // pred_fallthru
          _
        %s201 = sand.u32 %s81, 1
        %s202 = scalar_lea.sflag [#allocation8], %s201
        %s203 = sand.u32 %s81, 1
        %s204 = smul.addr %s203, 8
        %s205 = scalar_lea.vmem [#allocation7], %s204
        // Predicated region
        $region33: #{tpu_custom_call.1} parent=27 // pred_check
          %p206 = pneg %p94
        $region34: #{tpu_custom_call.1} parent=27 // pred_check_branch
          %208 = sbr.rel (%p206) target = $region36
        $region35: #{tpu_custom_call.1} parent=27 // pred_region
          %210 = dma.done %s202, 128
        $region36: #{tpu_custom_call.1} parent=27 // pred_fallthru
          _
        %s211 = sand.u32 %s53, 1
        %s212 = scalar_lea.sflag [#allocation5], %s211
        %s213 = sand.u32 %s53, 1
        %s214 = smul.addr %s213, 32
        %s215 = scalar_lea.vmem [#allocation4], %s214
        %p216 = pneg %p66
        %p217 = pneg %p63
        %s218 = sand.u32 %s81, 1
        %s219 = scalar_lea.sflag [#allocation8], %s218
        %s220 = sand.u32 %s81, 1
        %s221 = smul.addr %s220, 8
        %s222 = scalar_lea.vmem [#allocation7], %s221
        %p223 = pneg %p94
        %p224 = pneg %p91
        %p225 = pneg %p122
        %p226 = pneg %p119
        %s227 = sand.u32 %s109, 1
        %s228 = scalar_lea.sflag [#allocation6], %s227
        %s229 = sand.u32 %s109, 1
        %s230 = smul.addr %s229, 8
        %s231 = scalar_lea.vmem [#allocation9], %s230
        %v232 = vld [vmem:[%s195] sm:$0xff]
        %v233 = vld [vmem:[%s195 + $0x8] sm:$0xff]
        %v234 = vld [vmem:[%s195 + $0x10] sm:$0xff]
        %v235 = vld [vmem:[%s195 + $0x18] sm:$0xff]
        %v236 = vld [vmem:[%s205] sm:$0xff]
        %v237 = vmax.f32 %v232, %v233
        %v238 = vmax.f32 %v234, %v235
        %v239 = vmax.f32 %v237, %v238
        %v240 = vsub.f32 %v232, %v239
        %v241 = vsub.f32 %v233, %v239
        %v242 = vsub.f32 %v234, %v239
        %v243 = vsub.f32 %v235, %v239
        %v244 = vmul.f32 %v240, 1.442695
        %v245 = vpow.pop %v244
        %v246 = vmul.f32 %v241, 1.442695
        %v247 = vpow.pop %v246
        %v248 = vmul.f32 %v242, 1.442695
        %v249 = vpow.pop %v248
        %v250 = vmul.f32 %v243, 1.442695
        %v251 = vpow.pop %v250
        %v252 = vadd.f32 %v245, %v247
        %v253 = vadd.f32 %v252, %v249
        %v254 = vadd.f32 %v253, %v251
        %vm255 = vcmp.eq.s32.totalorder %v236, 0
        %vm256 = vcmp.eq.s32.totalorder %v236, 1
        %vm257 = vcmp.eq.s32.totalorder %v236, 2
        %vm258 = vcmp.eq.s32.totalorder %v236, 3
        %v259 = vsel %vm255, %v240, 0.0
        %v260 = vsel %vm256, %v241, 0.0
        %v261 = vsel %vm257, %v242, 0.0
        %v262 = vsel %vm258, %v243, 0.0
        %v263 = vadd.f32 %v259, %v260
        %v264 = vadd.f32 %v263, %v261
        %v265 = vadd.f32 %v264, %v262
        %v266 = vsel %vm255, %v245, 0.0
        %v267 = vsel %vm256, %v247, 0.0
        %v268 = vsel %vm257, %v249, 0.0
        %v269 = vsel %vm258, %v251, 0.0
        %v270 = vadd.f32 %v266, %v267
        %v271 = vadd.f32 %v270, %v268
        %v272 = vadd.f32 %v271, %v269
        %s273 = sld [smem:[#allocation3]]
        %v274 = vstv %s273
        %v275 = vsel %vm255, %v274, 0.0
        %v276 = vadd.f32 %v275, 0.0
        %s277 = sld [smem:[#allocation3 + $0x1]]
        %v278 = vstv %s277
        %v279 = vsel %vm256, %v278, 0.0
        %v280 = vadd.f32 %v276, %v279
        %s281 = sld [smem:[#allocation3 + $0x2]]
        %v282 = vstv %s281
        %v283 = vsel %vm257, %v282, 0.0
        %v284 = vadd.f32 %v280, %v283
        %s285 = sld [smem:[#allocation3 + $0x3]]
        %v286 = vstv %s285
        %v287 = vsel %vm258, %v286, 0.0
        %v288 = vadd.f32 %v284, %v287
        %v289 = vlog2.pop %v254
        %v290 = vmul.f32 %v289, 0.6931472
        %v291 = vsub.f32 %v265, %v290
        %v292 = vrcp.pop %v254
        %v293 = vmul.f32 %v254, %v292
        %v294 = vsub.f32 1.0, %v293
        %v295 = vmul.f32 %v292, %v294
        %v296 = vadd.f32 %v292, %v295
        %vm297 = vweird.f32 %v254
        %vm298 = vweird.f32 %v292
        %vm299 = vmor %vm297, %vm298
        %v300 = vsel %vm299, %v292, %v296
        %v301 = vand.u32 2147483647, %v254
        %vm302 = vcmp.eq.f32.partialorder %v301, 8.507059e+37
        %v303 = vand.u32 %v254, 2147483648
        %v304 = vor.u32 1.1754944e-38, %v303
        %v305 = vsel %vm302, %v304, %v300
        %v306 = vmul.f32 %v272, %v305
        %v307 = vsub.f32 1.0, %v306
        %v308 = vmul.f32 %v307, %v307
        %v309 = vsub.f32 0.0, %v288
        %v310 = vmul.f32 %v309, %v308
        %v311 = vmul.f32 %v310, %v291
        %v312 = vadd.f32 %v311, 0.0
        %313 = vst [vmem:[%s231] sm:$0xff] %v312
        %s314 = sand.u32 %s109, 1
        %s315 = scalar_lea.sflag [#allocation6], %s314
        %s316 = sand.u32 %s109, 1
        %s317 = smul.addr %s316, 8
        %s318 = scalar_lea.vmem [#allocation9], %s317
        // Predicated region
        $region37: #{tpu_custom_call.1} parent=27 // pred_check
          %p319 = pneg %p119
        $region38: #{tpu_custom_call.1} parent=27 // pred_check_branch
          %321 = sbr.rel (%p319) target = $region40
        $region39: #{tpu_custom_call.1} parent=27 // pred_region
          %323 = vsyncadd %s315, 0
          %s324 = sadd.s32 %s36, %s35
          %s325 = smul.addr %s324, 8
          %s326 = scalar_lea.hbm %s3, %s325
          %s328 = sshll.u32 %s318, 4
          %s329 = int_to_ptr.vmem [resolvable:$true] %s328
          %s330 = sshll.u32 %s326, 4
          %s331 = int_to_ptr.hbm [resolvable:$true] %s330
          %333 = dma.vmem_to_hbm [thread:$0]  %s329, 128, %s331, %s315
        $region40: #{tpu_custom_call.1} parent=27 // pred_fallthru
          _
      $region28: #{tpu_custom_call.1} parent=5 // pred_fallthru
        _
      %p334 = scmp.le.s32.totalorder 2, %s26
      // Predicated region
      $region41: #{tpu_custom_call.1} parent=5 // pred_check
        %p335 = pneg %p334
      $region42: #{tpu_custom_call.1} parent=5 // pred_check_branch
        %337 = sbr.rel (%p335) target = $region44
      $region43: #{tpu_custom_call.1} parent=5 // pred_region
        %s338 = ssub.s32 %s26, 2
        // Predicated region
        $region45: #{tpu_custom_call.1} parent=43 // pred_check
          %p339 = pneg %p125
        $region46: #{tpu_custom_call.1} parent=43 // pred_check_branch
          %341 = sbr.rel (%p339) target = $region48
        $region47: #{tpu_custom_call.1} parent=43 // pred_region
          %s342 = sand.u32 %s110, 1
          %s343 = scalar_lea.sflag [#allocation6], %s342
          %s344 = sand.u32 %s110, 1
          %s345 = smul.addr %s344, 8
          %s346 = scalar_lea.vmem [#allocation9], %s345
          %348 = dma.done %s343, 128
        $region48: #{tpu_custom_call.1} parent=43 // pred_fallthru
          _
      $region44: #{tpu_custom_call.1} parent=5 // pred_fallthru
        _
    $region6: #{tpu_custom_call.1} parent=1 // loop_footer
      %s30 = sadd.s32 1, %s26
    $region7: #{tpu_custom_call.1} parent=1 // loop_footer_branch
      %25 = sbr.rel target = $region3
    $region8: #{tpu_custom_call.1} parent=1 // loop_exit
      _
    %349 = vsyncpa [#allocation5], 1
    %s350 = scalar_lea.sflag [#allocation5], 1
    %351 = vsyncpa %s350, 1
    %352 = vsyncpa [#allocation8], 1
    %s353 = scalar_lea.sflag [#allocation8], 1
    %354 = vsyncpa %s353, 1
    %355 = vsyncpa [#allocation6], 1
    %s356 = scalar_lea.sflag [#allocation6], 1
    %357 = vsyncpa %s356, 1

</llo_original>
